<compile_context>
chip_gen: v6e
topology: v6e:2x2x1
jax: 0.10.0
libtpu: 0.0.40
codegen_flags: <defaults>
</compile_context>

<pallas_src>
import functools

import jax
import jax.numpy as jnp
from jax.experimental import pallas as pl
from jax.experimental.pallas import tpu as pltpu

ALPHA = 0.25
GAMMA = 4


def _int_pow(x, p):
    """x**p for non-negative integer p via squaring (VPU multiplies, no EUP pow)."""
    acc = None
    base = x
    while p > 0:
        if p & 1:
            acc = base if acc is None else acc * base
        base = base * base
        p >>= 1
    return acc if acc is not None else jnp.ones_like(x)


def _focal_loss_kernel(x_ref, t_ref, out_ref, *,
                       n_valid, tile_n, alpha, gamma, needs_mask):
    # x_ref: (TILE_N, C) logits in native dtype (samples on sublanes, classes on lanes)
    # t_ref: (TILE_N, 1) i32 target class indices
    # out_ref: (1, 8, 128) f32 per-tile partial-sum block
    x = x_ref[...].astype(jnp.float32)                             # (T, C)
    t = t_ref[...]                                                 # (T, 1)

    # numerically-stable log-sum-exp over the class (lane) axis
    m = jnp.max(x, axis=-1, keepdims=True)                         # (T, 1)
    e = jnp.exp(x - m)                                             # (T, C) EUP exp
    s = jnp.sum(e, axis=-1, keepdims=True)                         # (T, 1)

    # gather target logit via iota compare (VPU select, no cross-lane gather)
    cls = jax.lax.broadcasted_iota(jnp.int32, x.shape, 1)          # (T, C)
    onehot = (cls == t).astype(jnp.float32)                        # (T, C)
    tgt_logit = jnp.sum(x * onehot, axis=-1, keepdims=True)        # (T, 1)

    # per-sample cross-entropy and pt = exp(-ce) (exact PyTorch formula)
    ce = (jnp.log(s) + m) - tgt_logit                              # (T, 1)
    pt = jnp.exp(-ce)                                              # (T, 1) tiny EUP exp

    # focal weight: (1 - pt)^gamma strength-reduced to VPU multiplies
    w = 1.0 - pt
    wg = _int_pow(w, gamma) if isinstance(gamma, int) and gamma >= 0 else w ** gamma
    f = alpha * wg * ce                                            # (T, 1)

    if needs_mask:
        # mask rows of a partial last tile (select -> garbage/NaN rows become 0)
        i = pl.program_id(0)
        row = jax.lax.broadcasted_iota(jnp.int32, f.shape, 0) + i * tile_n
        f = jnp.where(row < n_valid, f, 0.0)

    partial = jnp.sum(f)                                           # scalar tile sum

    # write the tile's partial sum into element [0, 0, 0] of this tile's output
    # block (remaining 1023 positions are zero); final sum/mean happens in JAX.
    r = jax.lax.broadcasted_iota(jnp.int32, out_ref.shape, 1)
    c = jax.lax.broadcasted_iota(jnp.int32, out_ref.shape, 2)
    out_ref[...] = jnp.where((r == 0) & (c == 0), partial, 0.0).astype(jnp.float32)


def _pick_tile_n(c: int, n: int, itemsize: int) -> int:
    # ~4 MiB of logits per block (double-buffered by the pipeline -> ~8 MiB),
    # comfortably inside the scoped-VMEM budget on every generation.
    budget = 4 * 1024 * 1024
    t = budget // max(1, c * itemsize)
    t = max(8, (t // 8) * 8)              # sublane tile: multiple of 8
    t = min(t, 32768)
    n_pad8 = pl.cdiv(n, 8) * 8
    return max(8, min(t, n_pad8))         # don't over-tile tiny N
    # TODO(synk): for huge class counts (C * 8 rows * 4B > budget, ~>100K classes)
    # add a second grid axis over C with an online logsumexp.


def focal_loss(inputs, targets, *, alpha=ALPHA, gamma=GAMMA, tile_n=None):
    """inputs: (N, C) float logits, targets: (N,) int class indices. Returns mean focal loss."""
    n, c = inputs.shape
    if tile_n is None:
        tile_n = _pick_tile_n(c, n, jnp.dtype(inputs.dtype).itemsize)
    grid_n = pl.cdiv(n, tile_n)
    needs_mask = (n % tile_n) != 0

    # targets as an (N, 1) i32 column (metadata reshape, no extra HBM pass)
    t_col = targets.astype(jnp.int32).reshape(n, 1)

    kernel = functools.partial(
        _focal_loss_kernel,
        n_valid=n, tile_n=tile_n, alpha=float(alpha), gamma=int(gamma),
        needs_mask=needs_mask)

    partials = pl.pallas_call(
        kernel,
        out_shape=jax.ShapeDtypeStruct((grid_n, 8, 128), jnp.float32),
        grid_spec=pltpu.PrefetchScalarGridSpec(
            num_scalar_prefetch=0,
            grid=(grid_n,),
            in_specs=[
                pl.BlockSpec((tile_n, c), lambda i: (i, 0)),
                pl.BlockSpec((tile_n, 1), lambda i: (i, 0)),
            ],
            out_specs=pl.BlockSpec((1, 8, 128), lambda i: (i, 0, 0)),
        ),
        compiler_params=pltpu.CompilerParams(
            # no carried state -> grid axis is parallel (megacore-shardable on v7x)
            dimension_semantics=("parallel",),
            vmem_limit_bytes=32 * 1024 * 1024,
        ),
    )(inputs, t_col)

    # tiny final reduction (grid_n * 1024 floats) in plain JAX
    return jnp.sum(partials) / n


def _focal_loss_ref(inputs, targets, *, alpha=ALPHA, gamma=GAMMA):
    # pure-JAX reference (matches PyTorch FocalLoss forward with defaults)
    logp = jax.nn.log_softmax(inputs.astype(jnp.float32), axis=-1)
    ce = -jnp.take_along_axis(logp, targets[:, None].astype(jnp.int32), axis=-1)[:, 0]
    pt = jnp.exp(-ce)
    return jnp.mean(alpha * (1.0 - pt) ** gamma * ce)


if __name__ == "__main__":
    key = jax.random.PRNGKey(0)
    k1, k2, k3, k4 = jax.random.split(key, 4)

    # primary check: single full tile
    N, C = 8, 32
    logits = jax.random.normal(k1, (N, C), dtype=jnp.float32)
    targets = jax.random.randint(k2, (N,), 0, C, dtype=jnp.int32)
    loss = jax.block_until_ready(focal_loss(logits, targets))
    ref = jax.block_until_ready(_focal_loss_ref(logits, targets))
    assert jnp.allclose(loss, ref, rtol=1e-4, atol=1e-6), (loss, ref)

    # secondary check: multi-tile grid + masked partial last tile
    N2, C2 = 20, 32
    logits2 = jax.random.normal(k3, (N2, C2), dtype=jnp.float32)
    targets2 = jax.random.randint(k4, (N2,), 0, C2, dtype=jnp.int32)
    loss2 = jax.block_until_ready(focal_loss(logits2, targets2, tile_n=8))
    ref2 = jax.block_until_ready(_focal_loss_ref(logits2, targets2))
    assert jnp.allclose(loss2, ref2, rtol=1e-4, atol=1e-6), (loss2, ref2)

    print("KERNEL_OK")
</pallas_src>

<mosaic_0001>
module attributes {stable_mosaic.version = 11 : i64} {
  func.func @_focal_loss_kernel(%arg0: i32, %arg1: memref<8x32xf32, #tpu.memory_space<vmem>>, %arg2: memref<8x1xi32, #tpu.memory_space<vmem>>, %arg3: memref<1x8x128xf32, #tpu.memory_space<vmem>>) attributes {dimension_semantics = [#tpu.dimension_semantics<parallel>], iteration_bounds = array<i64: 1>, scalar_prefetch = 0 : i64, scratch_operands = 0 : i64, tpu.core_type = #tpu.core_type<tc>, window_params = [{transform_indices = @transform_0, window_bounds = array<i64: 8, 32>}, {transform_indices = @transform_1, window_bounds = array<i64: 8, 1>}, {transform_indices = @transform_2, window_bounds = array<i64: 1, 8, 128>}]} {
    %c0 = arith.constant 0 : index
    %c0_0 = arith.constant 0 : index
    %0 = vector.load %arg1[%c0, %c0_0] : memref<8x32xf32, #tpu.memory_space<vmem>>, vector<8x32xf32>
    %c0_1 = arith.constant 0 : index
    %c0_2 = arith.constant 0 : index
    %1 = vector.load %arg2[%c0_1, %c0_2] : memref<8x1xi32, #tpu.memory_space<vmem>>, vector<8x1xi32>
    %cst = arith.constant dense<0xFF800000> : vector<8xf32>
    %2 = vector.multi_reduction <maximumf>, %0, %cst [1] : vector<8x32xf32> to vector<8xf32>
    %3 = vector.shape_cast %2 : vector<8xf32> to vector<8x1xf32>
    %4 = vector.broadcast %3 : vector<8x1xf32> to vector<8x32xf32>
    %5 = arith.subf %0, %4 : vector<8x32xf32>
    %6 = math.exp %5 : vector<8x32xf32>
    %cst_3 = arith.constant dense<0.000000e+00> : vector<8xf32>
    %7 = vector.multi_reduction <add>, %6, %cst_3 [1] : vector<8x32xf32> to vector<8xf32>
    %8 = vector.shape_cast %7 : vector<8xf32> to vector<8x1xf32>
    %9 = tpu.iota {dimensions = array<i32: 1>} : vector<8x32xi32>
    %10 = vector.broadcast %1 : vector<8x1xi32> to vector<8x32xi32>
    %11 = arith.cmpi eq, %9, %10 : vector<8x32xi32>
    %12 = arith.extui %11 : vector<8x32xi1> to vector<8x32xi32>
    %13 = arith.sitofp %12 : vector<8x32xi32> to vector<8x32xf32>
    %14 = arith.mulf %0, %13 : vector<8x32xf32>
    %cst_4 = arith.constant dense<0.000000e+00> : vector<8xf32>
    %15 = vector.multi_reduction <add>, %14, %cst_4 [1] : vector<8x32xf32> to vector<8xf32>
    %16 = vector.shape_cast %15 : vector<8xf32> to vector<8x1xf32>
    %17 = math.log %8 : vector<8x1xf32>
    %18 = arith.addf %17, %3 : vector<8x1xf32>
    %19 = arith.subf %18, %16 : vector<8x1xf32>
    %cst_5 = arith.constant 0.000000e+00 : f32
    %20 = vector.broadcast %cst_5 : f32 to vector<8x1xf32>
    %21 = arith.subf %20, %19 : vector<8x1xf32>
    %22 = math.exp %21 : vector<8x1xf32>
    %cst_6 = arith.constant 1.000000e+00 : f32
    %23 = vector.broadcast %cst_6 : f32 to vector<8x1xf32>
    %24 = arith.subf %23, %22 : vector<8x1xf32>
    %25 = arith.mulf %24, %24 : vector<8x1xf32>
    %26 = arith.mulf %25, %25 : vector<8x1xf32>
    %cst_7 = arith.constant 2.500000e-01 : f32
    %27 = vector.broadcast %cst_7 : f32 to vector<8x1xf32>
    %28 = arith.mulf %27, %26 : vector<8x1xf32>
    %29 = arith.mulf %28, %19 : vector<8x1xf32>
    %30 = vector.shape_cast %29 : vector<8x1xf32> to vector<1x8x1xf32>
    %cst_8 = arith.constant dense<0.000000e+00> : vector<1xf32>
    %31 = vector.multi_reduction <add>, %30, %cst_8 [1, 2] : vector<1x8x1xf32> to vector<1xf32>
    %32 = vector.shape_cast %31 : vector<1xf32> to vector<1x1x1xf32>
    %33 = vector.extract %32[0, 0, 0] : f32 from vector<1x1x1xf32>
    %34 = tpu.iota {dimensions = array<i32: 1>} : vector<1x8x128xi32>
    %35 = tpu.iota {dimensions = array<i32: 2>} : vector<1x8x128xi32>
    %c0_i32 = arith.constant 0 : i32
    %36 = vector.broadcast %c0_i32 : i32 to vector<1x8x128xi32>
    %37 = arith.cmpi eq, %34, %36 : vector<1x8x128xi32>
    %c0_i32_9 = arith.constant 0 : i32
    %38 = vector.broadcast %c0_i32_9 : i32 to vector<1x8x128xi32>
    %39 = arith.cmpi eq, %35, %38 : vector<1x8x128xi32>
    %40 = arith.andi %37, %39 : vector<1x8x128xi1>
    %cst_10 = arith.constant 0.000000e+00 : f32
    %41 = vector.broadcast %33 : f32 to vector<1x8x128xf32>
    %42 = vector.broadcast %cst_10 : f32 to vector<1x8x128xf32>
    %43 = arith.select %40, %41, %42 : vector<1x8x128xi1>, vector<1x8x128xf32>
    %c0_11 = arith.constant 0 : index
    %c0_12 = arith.constant 0 : index
    %c0_13 = arith.constant 0 : index
    %44 = vector.load %arg3[%c0_11, %c0_12, %c0_13] : memref<1x8x128xf32, #tpu.memory_space<vmem>>, vector<1x8x128xf32>
    tpu.vector_store %arg3[%c0_11, %c0_12, %c0_13], %43 {strides = array<i32>} : memref<1x8x128xf32, #tpu.memory_space<vmem>>, vector<1x8x128xf32>,
    return
  }
  func.func @transform_0(%arg0: i32) -> (i32, i32) {
    %c0_i32 = arith.constant 0 : i32
    %c0_i32_0 = arith.constant 0 : i32
    return %arg0, %c0_i32 : i32, i32
  }
  func.func @transform_1(%arg0: i32) -> (i32, i32) {
    %c0_i32 = arith.constant 0 : i32
    %c0_i32_0 = arith.constant 0 : i32
    return %arg0, %c0_i32 : i32, i32
  }
  func.func @transform_2(%arg0: i32) -> (i32, i32, i32) {
    %c0_i32 = arith.constant 0 : i32
    %c0_i32_0 = arith.constant 0 : i32
    %c0_i32_1 = arith.constant 0 : i32
    return %arg0, %c0_i32, %c0_i32_0 : i32, i32, i32
  }
}

</mosaic_0001>

<llo_original>
// kernel: tpu_custom_call.1
$region0: #{tpu_custom_call.1}
  #allocation0 [shape = 'u32[]', space=smem, size = 0x4, offset = 0x4, fixed_abs, tag = 'smem constant byte address 0x4 - core index']
  #allocation1 [shape = 'u32[144,128]{1,0:T(1,128)}', space=vmem, size = 0x12000, scoped, tag = 'internal scratch']
  %s0 = inlined_call_operand.vmem [shape: f32[8,32], index: 0, kind: input, shape index: {}]
  %s1 = inlined_call_operand.vmem [shape: s32[8,1], index: 1, kind: input, shape index: {}]
  %s2 = inlined_call_operand.hbm [shape: f32[1,8,128], index: 2, kind: output, shape index: {}]
  %s3 = sld [smem:[#allocation0]]
  $region18: #{tpu_custom_call.1} parent=0
    _
  %s5 = ssub.s32 1, %s3
  %s6 = scalar_select 0, %s5, %s3
  $region1: #{tpu_custom_call.1} parent=0
    #allocation2 [shape = 'u8[4096]{0}', space=vmem, size = 0x1000, scoped, tag = 'output window, operand 0, single buffered']
    #allocation3 [shape = 's32[1]{0}', space=sflag, size = 0x4, scoped, tag = 'scoped memory for tpu_custom_call.1']
    %7 = vsyncpa [#allocation3], 0
    // Predicated region
    $region2: #{tpu_custom_call.1} parent=1 // pred_check
      _
    $region3: #{tpu_custom_call.1} parent=1 // pred_check_branch
      %9 = sbr.rel (0) target = $region5
    $region4: #{tpu_custom_call.1} parent=1 // pred_region
      _
    $region5: #{tpu_custom_call.1} parent=1 // pred_fallthru
      _
    // Predicated region
    $region6: #{tpu_custom_call.1} parent=1 // pred_check
      _
    $region7: #{tpu_custom_call.1} parent=1 // pred_check_branch
      %11 = sbr.rel (0) target = $region9
    $region8: #{tpu_custom_call.1} parent=1 // pred_region
      _
    $region9: #{tpu_custom_call.1} parent=1 // pred_fallthru
      _
    %v12 = vld [vmem:[%s0] sm:$0xff]
    %v13 = vld [vmem:[%s1] sm:$0xff]
    %vm14 = vcmask 261120
    %v15 = vsel %vm14, %v12, -inf
    %16 = vmax.xlane.f32.xlu0 %v15
    %v17 = vpop.xlane.xlu0 %16
    %v18 = vsub.f32 %v12, %v17
    %v19 = vmul.f32 %v18, 1.442695
    %v20 = vpow.pop %v19
    %v21 = vsel %vm14, %v20, 0.0
    %22 = vadd.xlane.f32.xlu0 %v21
    %v23 = vpop.xlane.xlu0 %22
    %v24 = vlaneseq
    %v25 = vand.u32 %v24, 127
    %26 = vset.pattern.permute.xlu0 0
    %27 = vperm.xlu0 %26, %v13
    %v28 = vpop.permute.xlu0 %27
    %vm29 = vcmp.eq.s32.totalorder %v25, %v28
    %v30 = vsel %vm29, 1, 0
    %v31 = vcvt.s32.f32 %v30
    %v32 = vmul.f32 %v12, %v31
    %v33 = vsel %vm14, %v32, 0.0
    %34 = vadd.xlane.f32.xlu0 %v33
    %v35 = vpop.xlane.xlu0 %34
    %v36 = vlog2.pop %v23
    %v37 = vmul.f32 %v36, 0.6931472
    %v38 = vadd.f32 %v37, %v17
    %v39 = vsub.f32 %v38, %v35
    %v40 = vsub.f32 0.0, %v39
    %v41 = vmul.f32 %v40, 1.442695
    %v42 = vpow.pop %v41
    %v43 = vsub.f32 1.0, %v42
    %v44 = vmul.f32 %v43, %v43
    %v45 = vmul.f32 %v44, %v44
    %v46 = vmul.f32 %v45, 0.25
    %v47 = vmul.f32 %v46, %v39
    %vm48 = vcmask 7168
    %v49 = vsel %vm48, %v47, 0.0
    %50 = vadd.xlane.f32.xlu0 %v49
    %v51 = vpop.xlane.xlu0 %50
    %v52 = vrot.slane %v51, 4
    %v53 = vadd.f32 %v51, %v52
    %v54 = vrot.slane %v53, 2
    %v55 = vadd.f32 %v53, %v54
    %v56 = vrot.slane %v55, 1
    %v57 = vadd.f32 %v55, %v56
    %s58 = vtos %v57
    %v59 = vlaneseq
    %v60 = vshrl.u32 %v59, 7
    %vm61 = vcmp.eq.s32.totalorder %v60, 0
    %vm62 = vcmp.eq.s32.totalorder %v25, 0
    %vm63 = vmand %vm61, %vm62
    %v64 = vstv %s58
    %v65 = vsel %vm63, %v64, 0.0
    %66 = vst [vmem:[#allocation2] sm:$0xff] %v65
    // Predicated region
    $region10: #{tpu_custom_call.1} parent=1 // pred_check
      _
    $region11: #{tpu_custom_call.1} parent=1 // pred_check_branch
      %68 = sbr.rel (0) target = $region13
    $region12: #{tpu_custom_call.1} parent=1 // pred_region
      %s70 = ssub.s32 128, 128
      %71 = vsyncadd [#allocation3], %s70
      %s73 = sshll.u32 [#allocation2], 4
      %s74 = int_to_ptr.vmem [resolvable:$true] %s73
      %76 = dma.vmem_to_hbm [thread:$0]  %s74, 128, %s2, [#allocation3]
    $region13: #{tpu_custom_call.1} parent=1 // pred_fallthru
      _
    // Predicated region
    $region14: #{tpu_custom_call.1} parent=1 // pred_check
      _
    $region15: #{tpu_custom_call.1} parent=1 // pred_check_branch
      %78 = sbr.rel (0) target = $region17
    $region16: #{tpu_custom_call.1} parent=1 // pred_region
      %79 = dma.done [#allocation3], 128
    $region17: #{tpu_custom_call.1} parent=1 // pred_fallthru
      _
    %80 = vsyncpa [#allocation3], 1

</llo_original>
